<compile_context>
chip_gen: v5e
topology: v5e:2x2
jax: 0.10.0
libtpu: 0.0.40
codegen_flags: <defaults>
</compile_context>

<pallas_src>
import math

import jax
import jax.numpy as jnp
from jax.experimental import pallas as pl
from jax.experimental.pallas import tpu as pltpu

_LANE = 128
_TILE_BYTES = 4 * 1024 * 1024    # ~4 MiB block: near HBM roofline, v7x-safe
_VMEM_LIMIT = 48 * 1024 * 1024   # headroom under v7x's 64 MiB physical VMEM


def _steplu_kernel(x_ref, o_ref, *, threshold):
    x = x_ref[...]
    zero = jnp.zeros((), dtype=x.dtype)
    thr = jnp.asarray(threshold, dtype=x.dtype)
    pv = jnp.maximum(x - thr, zero)
    nv = jnp.minimum(x + thr, zero)
    o_ref[...] = jnp.where(x >= zero, pv, nv)


def _pick_width(n):
    """Largest lane-dense width that divides n exactly (padding-free path)."""
    for w in (4096, 2048, 1024, 512, 256, 128):
        if n % w == 0:
            return w
    return None


def steplu(x, threshold=0.5):
    """Apply StepLU elementwise to an array of any shape (e.g. NCHW)."""
    orig_shape = x.shape
    orig_dtype = x.dtype
    n = math.prod(orig_shape) if orig_shape else 1

    flat = x.reshape(-1)

    w = _pick_width(n)
    padded = n
    if w is None:
        # Ragged element count: pad only to the next multiple of one lane row.
        w = _LANE
        padded = pl.cdiv(n, w) * w
        flat = jnp.pad(flat, (0, padded - n))

    rows = padded // w
    slab = flat.reshape(rows, w)

    # Row-block sized for ~4 MiB tiles; multiple of 8 sublanes (or full dim).
    itemsize = jnp.dtype(orig_dtype).itemsize
    target_rows = max(8, (_TILE_BYTES // (w * itemsize)) // 8 * 8)
    block_rows = rows if rows <= target_rows else target_rows
    grid = (pl.cdiv(rows, block_rows),)

    # NOTE: threshold is a construction-time constant, so a closure is fine.
    # If it ever becomes a runtime value, pass it as an SMEM scalar instead.
    kernel = lambda x_ref, o_ref: _steplu_kernel(x_ref, o_ref, threshold=threshold)

    out = pl.pallas_call(
        kernel,
        out_shape=jax.ShapeDtypeStruct((rows, w), orig_dtype),
        grid_spec=pltpu.PrefetchScalarGridSpec(
            num_scalar_prefetch=0,
            grid=grid,
            in_specs=[pl.BlockSpec((block_rows, w), lambda i: (i, 0))],
            out_specs=pl.BlockSpec((block_rows, w), lambda i: (i, 0)),
        ),
        compiler_params=pltpu.CompilerParams(
            dimension_semantics=("parallel",),
            vmem_limit_bytes=_VMEM_LIMIT,
        ),
    )(slab)

    if padded != n:
        return out.reshape(-1)[:n].reshape(orig_shape)
    return out.reshape(orig_shape)


def steplu_ref(x, threshold=0.5):
    zero = jnp.zeros((), dtype=x.dtype)
    pv = jnp.maximum(x - threshold, zero)
    nv = jnp.minimum(x + threshold, zero)
    return jnp.where(x >= zero, pv, nv)


if __name__ == "__main__":
    key = jax.random.PRNGKey(0)
    # NCHW input consistent with typical conv activations.
    x = jax.random.normal(key, (2, 4, 16, 16), dtype=jnp.float32)

    y = steplu(x, threshold=0.5)
    y = jax.block_until_ready(y)

    y_ref = steplu_ref(x, threshold=0.5)
    assert y.shape == x.shape and y.dtype == x.dtype
    assert jnp.allclose(y, y_ref, atol=1e-6, rtol=1e-6), "mismatch vs reference"

    # Also exercise the multi-block, padding-free path with a larger tensor.
    x_big = jax.random.normal(jax.random.PRNGKey(1), (8, 64, 64, 64), dtype=jnp.float32)
    y_big = jax.block_until_ready(steplu(x_big, threshold=0.5))
    assert jnp.allclose(y_big, steplu_ref(x_big, threshold=0.5), atol=1e-6, rtol=1e-6)

    print("KERNEL_OK")
</pallas_src>

<mosaic_0001>
module attributes {stable_mosaic.version = 11 : i64} {
  func.func @_lambda_(%arg0: i32, %arg1: memref<1x2048xf32, #tpu.memory_space<vmem>>, %arg2: memref<1x2048xf32, #tpu.memory_space<vmem>>) attributes {dimension_semantics = [#tpu.dimension_semantics<parallel>], iteration_bounds = array<i64: 1>, scalar_prefetch = 0 : i64, scratch_operands = 0 : i64, tpu.core_type = #tpu.core_type<tc>, window_params = [{transform_indices = @transform_0, window_bounds = array<i64: 1, 2048>}, {transform_indices = @transform_1, window_bounds = array<i64: 1, 2048>}]} {
    %c0 = arith.constant 0 : index
    %c0_0 = arith.constant 0 : index
    %0 = vector.load %arg1[%c0, %c0_0] : memref<1x2048xf32, #tpu.memory_space<vmem>>, vector<1x2048xf32>
    %cst = arith.constant 5.000000e-01 : f32
    %1 = vector.broadcast %cst : f32 to vector<1x2048xf32>
    %2 = arith.subf %0, %1 : vector<1x2048xf32>
    %cst_1 = arith.constant 0.000000e+00 : f32
    %3 = vector.broadcast %cst_1 : f32 to vector<1x2048xf32>
    %4 = arith.maximumf %2, %3 : vector<1x2048xf32>
    %cst_2 = arith.constant 5.000000e-01 : f32
    %5 = vector.broadcast %cst_2 : f32 to vector<1x2048xf32>
    %6 = arith.addf %0, %5 : vector<1x2048xf32>
    %cst_3 = arith.constant 0.000000e+00 : f32
    %7 = vector.broadcast %cst_3 : f32 to vector<1x2048xf32>
    %8 = arith.minimumf %6, %7 : vector<1x2048xf32>
    %cst_4 = arith.constant 0.000000e+00 : f32
    %9 = vector.broadcast %cst_4 : f32 to vector<1x2048xf32>
    %10 = arith.cmpf oge, %0, %9 : vector<1x2048xf32>
    %11 = arith.select %10, %4, %8 : vector<1x2048xi1>, vector<1x2048xf32>
    %c0_5 = arith.constant 0 : index
    %c0_6 = arith.constant 0 : index
    %12 = vector.load %arg2[%c0_5, %c0_6] : memref<1x2048xf32, #tpu.memory_space<vmem>>, vector<1x2048xf32>
    tpu.vector_store %arg2[%c0_5, %c0_6], %11 {strides = array<i32>} : memref<1x2048xf32, #tpu.memory_space<vmem>>, vector<1x2048xf32>,
    return
  }
  func.func @transform_0(%arg0: i32) -> (i32, i32) {
    %c0_i32 = arith.constant 0 : i32
    %c0_i32_0 = arith.constant 0 : i32
    return %arg0, %c0_i32 : i32, i32
  }
  func.func @transform_1(%arg0: i32) -> (i32, i32) {
    %c0_i32 = arith.constant 0 : i32
    %c0_i32_0 = arith.constant 0 : i32
    return %arg0, %c0_i32 : i32, i32
  }
}

</mosaic_0001>

<llo_original>
// kernel: tpu_custom_call.1
$region0: #{tpu_custom_call.1}
  #allocation0 [shape = 'u32[]', space=smem, size = 0x4, offset = 0x4, fixed_abs, tag = 'smem constant byte address 0x4 - core index']
  #allocation1 [shape = 'u32[72,128]{1,0:T(1,128)}', space=vmem, size = 0x9000, scoped, tag = 'internal scratch']
  %s0 = inlined_call_operand.hbm [shape: f32[1,2048], index: 0, kind: input, shape index: {}]
  %s1 = inlined_call_operand.hbm [shape: f32[1,2048], index: 1, kind: output, shape index: {}]
  %s2 = sld [smem:[#allocation0]]
  $region18: #{tpu_custom_call.1} parent=0
    _
  %s4 = ssub.s32 1, %s2
  %s5 = scalar_select 0, %s4, %s2
  $region1: #{tpu_custom_call.1} parent=0
    #allocation2 [shape = 'u8[8192]{0}', space=vmem, size = 0x2000, scoped, tag = 'input window, operand 0, single buffered']
    #allocation3 [shape = 's32[1]{0}', space=sflag, size = 0x4, scoped, tag = 'scoped memory for tpu_custom_call.1']
    #allocation4 [shape = 's32[1]{0}', space=sflag, size = 0x4, scoped, tag = 'scoped memory for tpu_custom_call.1']
    #allocation5 [shape = 'u8[8192]{0}', space=vmem, size = 0x2000, scoped, tag = 'output window, operand 0, single buffered']
    %6 = vsyncpa [#allocation3], 0
    %7 = vsyncpa [#allocation4], 0
    // Predicated region
    $region2: #{tpu_custom_call.1} parent=1 // pred_check
      _
    $region3: #{tpu_custom_call.1} parent=1 // pred_check_branch
      %9 = sbr.rel (0) target = $region5
    $region4: #{tpu_custom_call.1} parent=1 // pred_region
      %11 = vsyncadd [#allocation3], 0
      %s13 = sshll.u32 %s0, 4
      %s14 = int_to_ptr.hbm [resolvable:$true] %s13
      %s15 = sshll.u32 [#allocation2], 4
      %s16 = int_to_ptr.vmem [resolvable:$true] %s15
      %18 = dma.hbm_to_vmem [thread:$0]  %s14, 256, %s16, [#allocation3]
    $region5: #{tpu_custom_call.1} parent=1 // pred_fallthru
      _
    // Predicated region
    $region6: #{tpu_custom_call.1} parent=1 // pred_check
      _
    $region7: #{tpu_custom_call.1} parent=1 // pred_check_branch
      %20 = sbr.rel (0) target = $region9
    $region8: #{tpu_custom_call.1} parent=1 // pred_region
      %22 = dma.done [#allocation3], 256
    $region9: #{tpu_custom_call.1} parent=1 // pred_fallthru
      _
    %v23 = vld [vmem:[#allocation2] sm:$0xff]
    %v24 = vld [vmem:[#allocation2 + $0x8] sm:$0xff]
    %v25 = vsub.f32 %v23, 0.5
    %v26 = vsub.f32 %v24, 0.5
    %v27 = vmax.f32 %v25, 0.0
    %v28 = vmax.f32 %v26, 0.0
    %v29 = vadd.f32 %v23, 0.5
    %v30 = vadd.f32 %v24, 0.5
    %v31 = vmin.f32 %v29, 0.0
    %v32 = vmin.f32 %v30, 0.0
    %vm33 = vcmp.ge.f32.partialorder %v23, 0.0
    %vm34 = vcmp.ge.f32.partialorder %v24, 0.0
    %v35 = vsel %vm33, %v27, %v31
    %v36 = vsel %vm34, %v28, %v32
    %37 = vst [vmem:[#allocation5] sm:$0xff] %v35
    %38 = vst [vmem:[#allocation5 + $0x8] sm:$0xff] %v36
    // Predicated region
    $region10: #{tpu_custom_call.1} parent=1 // pred_check
      _
    $region11: #{tpu_custom_call.1} parent=1 // pred_check_branch
      %40 = sbr.rel (0) target = $region13
    $region12: #{tpu_custom_call.1} parent=1 // pred_region
      %42 = vsyncadd [#allocation4], 0
      %s44 = sshll.u32 [#allocation5], 4
      %s45 = int_to_ptr.vmem [resolvable:$true] %s44
      %s46 = sshll.u32 %s1, 4
      %s47 = int_to_ptr.hbm [resolvable:$true] %s46
      %49 = dma.vmem_to_hbm [thread:$0]  %s45, 256, %s47, [#allocation4]
    $region13: #{tpu_custom_call.1} parent=1 // pred_fallthru
      _
    // Predicated region
    $region14: #{tpu_custom_call.1} parent=1 // pred_check
      _
    $region15: #{tpu_custom_call.1} parent=1 // pred_check_branch
      %51 = sbr.rel (0) target = $region17
    $region16: #{tpu_custom_call.1} parent=1 // pred_region
      %53 = dma.done [#allocation4], 256
    $region17: #{tpu_custom_call.1} parent=1 // pred_fallthru
      _
    %54 = vsyncpa [#allocation3], 1
    %55 = vsyncpa [#allocation4], 1

</llo_original>
